<compile_context>
chip_gen: v7x
topology: tpu7x:2x2x1
jax: 0.10.0
libtpu: 0.0.40
codegen_flags: <defaults>
</compile_context>

<pallas_src>
import jax
import jax.numpy as jnp
from jax.experimental import pallas as pl
from jax.experimental.pallas import tpu as pltpu


LATENT_DIM = 32
HIDDEN_UNITS = 256
OUT_FEATURES = 3                     # continuous controller -> 3 actions

LANE = 128
# Hidden block starts at the next lane-tile boundary after the latent block so
# both in-kernel copies into the concat scratch are lane-aligned stores.
HIDDEN_OFFSET = ((LATENT_DIM + LANE - 1) // LANE) * LANE        # 128
K_PAD = HIDDEN_OFFSET + HIDDEN_UNITS                            # 384
O_PAD = ((OUT_FEATURES + LANE - 1) // LANE) * LANE              # 128 (lane-dense out)


def _controller_kernel(lat_ref, hid_ref, w_ref, b_ref, out_ref, cat_ref):
    """out = tanh(cat([lat, hid], -1) @ W + b), fused into one MXU drain."""
    # Scratch is uninitialized: clear it so the zero-weight pad lanes can't
    # pick up NaN/Inf garbage, then drop the two operands in at aligned lanes.
    cat_ref[...] = jnp.zeros_like(cat_ref)
    cat_ref[:, :LATENT_DIM] = lat_ref[...].astype(cat_ref.dtype)
    cat_ref[:, HIDDEN_OFFSET:] = hid_ref[...].astype(cat_ref.dtype)

    acc = jnp.dot(cat_ref[...], w_ref[...], preferred_element_type=jnp.float32)
    out_ref[...] = jnp.tanh(acc + b_ref[...]).astype(out_ref.dtype)


def _controller_call(batch, dtype):
    vmem = pl.BlockSpec(memory_space=pltpu.MemorySpace.VMEM)
    return pl.pallas_call(
        _controller_kernel,
        out_shape=jax.ShapeDtypeStruct((batch, O_PAD), dtype),
        in_specs=[vmem, vmem, vmem, vmem],
        out_specs=vmem,
        scratch_shapes=[pltpu.VMEM((batch, K_PAD), jnp.float32)],
    )


@jax.jit
def controller_forward(latent, hidden, w_pad, b_pad):
    """latent: (B, 32), hidden: (B, 256), w_pad: (384, 128), b_pad: (1, 128).

    Returns tanh(concat([latent, hidden], -1) @ W + b) with shape (B, 3).
    """
    B = latent.shape[0]
    out_pad = _controller_call(B, latent.dtype)(latent, hidden, w_pad, b_pad)
    return out_pad[:, :OUT_FEATURES]


def pack_controller_params(w, b, latent_dimension=LATENT_DIM):
    """One-time packing of a logical [(L+H), O] weight and [O] bias.

    Latent rows land at [0:L], hidden rows at [128:128+H] (lane-tile aligned
    with the in-kernel concat); all pad rows/cols are zero so they contribute
    nothing. Output columns are padded to 128 for a lane-dense store.
    """
    in_features, out_features = w.shape
    hidden_units = in_features - latent_dimension
    w_pad = jnp.zeros((K_PAD, O_PAD), jnp.float32)
    w_pad = w_pad.at[:latent_dimension, :out_features].set(w[:latent_dimension])
    w_pad = w_pad.at[HIDDEN_OFFSET:HIDDEN_OFFSET + hidden_units,
                     :out_features].set(w[latent_dimension:])
    b_pad = jnp.zeros((1, O_PAD), jnp.float32).at[0, :out_features].set(b)
    return w_pad, b_pad


def init_controller_params(key, latent_dimension=LATENT_DIM,
                           hidden_units=HIDDEN_UNITS, continuous=True):
    """nn.Linear-style init (uniform +-1/sqrt(fan_in)); returns both the packed
    kernel layout and the logical [in, out] weight / [out] bias."""
    in_features = latent_dimension + hidden_units
    out_features = 3 if continuous else 1
    k_w, k_b = jax.random.split(key)
    bound = 1.0 / jnp.sqrt(jnp.float32(in_features))
    w = jax.random.uniform(k_w, (in_features, out_features), jnp.float32,
                           -bound, bound)
    b = jax.random.uniform(k_b, (out_features,), jnp.float32, -bound, bound)
    return pack_controller_params(w, b, latent_dimension), (w, b)


if __name__ == "__main__":
    BATCH = 2

    key = jax.random.PRNGKey(0)
    k_lat, k_hid, k_params = jax.random.split(key, 3)

    latent_observation = jax.random.normal(k_lat, (BATCH, LATENT_DIM),
                                           jnp.float32)
    hidden_state = jax.random.normal(k_hid, (BATCH, HIDDEN_UNITS), jnp.float32)
    (w_pad, b_pad), (w, b) = init_controller_params(k_params, LATENT_DIM,
                                                    HIDDEN_UNITS,
                                                    continuous=True)

    out = controller_forward(latent_observation, hidden_state, w_pad, b_pad)
    out = jax.block_until_ready(out)

    # Reference check against plain JAX (same math as the torch module).
    ref = jnp.tanh(jnp.concatenate([latent_observation, hidden_state],
                                   axis=-1) @ w + b)
    assert out.shape == (BATCH, OUT_FEATURES)
    assert jnp.allclose(out, ref, atol=1e-5, rtol=1e-5)

    print("KERNEL_OK")
</pallas_src>

<mosaic_0001>
module attributes {stable_mosaic.version = 11 : i64} {
  func.func @_controller_kernel(%arg0: memref<2x32xf32, #tpu.memory_space<vmem>>, %arg1: memref<2x256xf32, #tpu.memory_space<vmem>>, %arg2: memref<384x128xf32, #tpu.memory_space<vmem>>, %arg3: memref<1x128xf32, #tpu.memory_space<vmem>>, %arg4: memref<2x128xf32, #tpu.memory_space<vmem>>, %arg5: memref<2x384xf32, #tpu.memory_space<vmem>>) attributes {dimension_semantics = [], scalar_prefetch = 0 : i64, scratch_operands = 1 : i64, tpu.core_type = #tpu.core_type<tc>} {
    %cst = arith.constant 0.000000e+00 : f32
    %0 = vector.broadcast %cst : f32 to vector<2x384xf32>
    %c0 = arith.constant 0 : index
    %c0_0 = arith.constant 0 : index
    %1 = vector.load %arg5[%c0, %c0_0] : memref<2x384xf32, #tpu.memory_space<vmem>>, vector<2x384xf32>
    tpu.vector_store %arg5[%c0, %c0_0], %0 {strides = array<i32>} : memref<2x384xf32, #tpu.memory_space<vmem>>, vector<2x384xf32>,
    %c0_1 = arith.constant 0 : index
    %c0_2 = arith.constant 0 : index
    %2 = vector.load %arg0[%c0_1, %c0_2] : memref<2x32xf32, #tpu.memory_space<vmem>>, vector<2x32xf32>
    %c0_3 = arith.constant 0 : index
    %c0_4 = arith.constant 0 : index
    %3 = vector.load %arg5[%c0_3, %c0_4] : memref<2x384xf32, #tpu.memory_space<vmem>>, vector<2x32xf32>
    tpu.vector_store %arg5[%c0_3, %c0_4], %2 {strides = array<i32>} : memref<2x384xf32, #tpu.memory_space<vmem>>, vector<2x32xf32>,
    %c0_5 = arith.constant 0 : index
    %c0_6 = arith.constant 0 : index
    %4 = vector.load %arg1[%c0_5, %c0_6] : memref<2x256xf32, #tpu.memory_space<vmem>>, vector<2x256xf32>
    %c0_7 = arith.constant 0 : index
    %c128 = arith.constant 128 : index
    %5 = vector.load %arg5[%c0_7, %c128] : memref<2x384xf32, #tpu.memory_space<vmem>>, vector<2x256xf32>
    tpu.vector_store %arg5[%c0_7, %c128], %4 {strides = array<i32>} : memref<2x384xf32, #tpu.memory_space<vmem>>, vector<2x256xf32>,
    %c0_8 = arith.constant 0 : index
    %c0_9 = arith.constant 0 : index
    %6 = vector.load %arg5[%c0_8, %c0_9] : memref<2x384xf32, #tpu.memory_space<vmem>>, vector<2x384xf32>
    %c0_10 = arith.constant 0 : index
    %c0_11 = arith.constant 0 : index
    %7 = vector.load %arg2[%c0_10, %c0_11] : memref<384x128xf32, #tpu.memory_space<vmem>>, vector<384x128xf32>
    %cst_12 = arith.constant dense<0.000000e+00> : vector<2x128xf32>
    %8 = tpu.matmul %6, %7, %cst_12 {dimension_numbers = #tpu.dot_dimension_numbers<[1], [0], [0], [1], [0, 0, 1, 1], [], []>} : vector<2x384xf32>, vector<384x128xf32>, vector<2x128xf32> -> vector<2x128xf32>
    %c0_13 = arith.constant 0 : index
    %c0_14 = arith.constant 0 : index
    %9 = vector.load %arg3[%c0_13, %c0_14] : memref<1x128xf32, #tpu.memory_space<vmem>>, vector<1x128xf32>
    %10 = vector.broadcast %9 : vector<1x128xf32> to vector<2x128xf32>
    %11 = arith.addf %8, %10 : vector<2x128xf32>
    %12 = math.tanh %11 : vector<2x128xf32>
    %c0_15 = arith.constant 0 : index
    %c0_16 = arith.constant 0 : index
    %13 = vector.load %arg4[%c0_15, %c0_16] : memref<2x128xf32, #tpu.memory_space<vmem>>, vector<2x128xf32>
    tpu.vector_store %arg4[%c0_15, %c0_16], %12 {strides = array<i32>} : memref<2x128xf32, #tpu.memory_space<vmem>>, vector<2x128xf32>,
    return
  }
}

</mosaic_0001>

<llo_original>
// kernel: controller_forward.1
$region0: #{controller_forward.1}
  #allocation0 [shape = 'u32[]', space=smem, size = 0x4, offset = 0x4, fixed_abs, tag = 'smem constant byte address 0x4 - core index']
  #allocation1 [shape = 'u32[144,128]{1,0:T(1,128)}', space=vmem, size = 0x12000, scoped, tag = 'internal scratch']
  #allocation2 [shape = 'f32[2,384]{1,0:T(2,128)}', space=vmem, size = 0xc00, scoped, tag = 'scratch operand']
  %s0 = inlined_call_operand.hbm [shape: f32[2,32], index: 0, kind: input, shape index: {}]
  %s1 = inlined_call_operand.hbm [shape: f32[2,256], index: 1, kind: input, shape index: {}]
  %s2 = inlined_call_operand.hbm [shape: f32[384,128], index: 2, kind: input, shape index: {}]
  %s3 = inlined_call_operand.vmem [shape: f32[1,128], index: 3, kind: input, shape index: {}]
  %s4 = inlined_call_operand.hbm [shape: f32[2,128], index: 4, kind: output, shape index: {}]
  %s5 = sld [smem:[#allocation0]]
  $region38: #{controller_forward.1} parent=0
    _
  %s7 = ssub.s32 1, %s5
  %s8 = scalar_select 0, %s7, %s5
  $region1: #{controller_forward.1} parent=0
    #allocation3 [shape = 'u8[1024]{0}', space=vmem, size = 0x400, scoped, tag = 'input window, operand 0, single buffered']
    #allocation4 [shape = 's32[1]{0}', space=sflag, size = 0x4, scoped, tag = 'scoped memory for controller_forward.1']
    #allocation5 [shape = 's32[1]{0}', space=sflag, size = 0x4, scoped, tag = 'scoped memory for controller_forward.1']
    #allocation6 [shape = 'u8[2048]{0}', space=vmem, size = 0x800, scoped, tag = 'input window, operand 1, single buffered']
    #allocation7 [shape = 's32[1]{0}', space=sflag, size = 0x4, scoped, tag = 'scoped memory for controller_forward.1']
    #allocation8 [shape = 'u8[196608]{0}', space=vmem, size = 0x30000, scoped, tag = 'input window, operand 2, single buffered']
    #allocation9 [shape = 'u8[1024]{0}', space=vmem, size = 0x400, scoped, tag = 'output window, operand 0, single buffered']
    %9 = vsyncpa [#allocation4], 0
    %10 = vsyncpa [#allocation7], 0
    %11 = vsyncpa [#allocation5], 0
    // Predicated region
    $region2: #{controller_forward.1} parent=1 // pred_check
      _
    $region3: #{controller_forward.1} parent=1 // pred_check_branch
      %13 = sbr.rel (0) target = $region5
    $region4: #{controller_forward.1} parent=1 // pred_region
      %s15 = ssub.s32 32, 32
      %16 = vsyncadd [#allocation4], %s15
      %s18 = sshll.u32 [#allocation3], 4
      %s19 = int_to_ptr.vmem [resolvable:$true] %s18
      %21 = dma.hbm_to_vmem [thread:$0]  %s0, 32, %s19, [#allocation4]
    $region5: #{controller_forward.1} parent=1 // pred_fallthru
      _
    // Predicated region
    $region6: #{controller_forward.1} parent=1 // pred_check
      _
    $region7: #{controller_forward.1} parent=1 // pred_check_branch
      %23 = sbr.rel (0) target = $region9
    $region8: #{controller_forward.1} parent=1 // pred_region
      %s25 = ssub.s32 64, 64
      %26 = vsyncadd [#allocation7], %s25
      %s28 = sshll.u32 [#allocation6], 4
      %s29 = int_to_ptr.vmem [resolvable:$true] %s28
      %31 = dma.hbm_to_vmem [thread:$0]  %s1, 64, %s29, [#allocation7]
    $region9: #{controller_forward.1} parent=1 // pred_fallthru
      _
    // Predicated region
    $region10: #{controller_forward.1} parent=1 // pred_check
      _
    $region11: #{controller_forward.1} parent=1 // pred_check_branch
      %33 = sbr.rel (0) target = $region13
    $region12: #{controller_forward.1} parent=1 // pred_region
      %s35 = ssub.s32 6144, 6144
      %36 = vsyncadd [#allocation7], %s35
      %s37 = sshll.u32 [#allocation8], 4
      %s38 = int_to_ptr.vmem [resolvable:$true] %s37
      %43 = dma.hbm_to_vmem [thread:$0]  %s2, 6144, %s38, [#allocation7], 128, 128, 8
    $region13: #{controller_forward.1} parent=1 // pred_fallthru
      _
    // Predicated region
    $region14: #{controller_forward.1} parent=1 // pred_check
      _
    $region15: #{controller_forward.1} parent=1 // pred_check_branch
      %45 = sbr.rel (0) target = $region17
    $region16: #{controller_forward.1} parent=1 // pred_region
      _
    $region17: #{controller_forward.1} parent=1 // pred_fallthru
      _
    // Predicated region
    $region18: #{controller_forward.1} parent=1 // pred_check
      _
    $region19: #{controller_forward.1} parent=1 // pred_check_branch
      %47 = sbr.rel (0) target = $region21
    $region20: #{controller_forward.1} parent=1 // pred_region
      %48 = dma.done [#allocation4], 32
    $region21: #{controller_forward.1} parent=1 // pred_fallthru
      _
    // Predicated region
    $region22: #{controller_forward.1} parent=1 // pred_check
      _
    $region23: #{controller_forward.1} parent=1 // pred_check_branch
      %50 = sbr.rel (0) target = $region25
    $region24: #{controller_forward.1} parent=1 // pred_region
      %51 = dma.done [#allocation7], 64
    $region25: #{controller_forward.1} parent=1 // pred_fallthru
      _
    // Predicated region
    $region26: #{controller_forward.1} parent=1 // pred_check
      _
    $region27: #{controller_forward.1} parent=1 // pred_check_branch
      %53 = sbr.rel (0) target = $region29
    $region28: #{controller_forward.1} parent=1 // pred_region
      %54 = dma.done [#allocation7], 6144
    $region29: #{controller_forward.1} parent=1 // pred_fallthru
      _
    %55 = vst [vmem:[#allocation2] sm:$0x3f] 0.0
    %v56 = vld [vmem:[#allocation3] sm:$0x3]
    %vm57 = vcmask 254976
    %58 = vst.msk [vmem:[#allocation2] sm:$0x3] %vm57, %v56
    %v59 = vld [vmem:[#allocation6] sm:$0xf]
    %60 = vst [vmem:[#allocation2 + $0x2] sm:$0xf] %v59
    %v61 = vld [vmem:[#allocation2] sm:$0x3f]
    %v62 = vld [vmem:[#allocation8] sm:$0xff]
    %v63 = vld [vmem:[#allocation8 + $0x8] sm:$0xff]
    %v64 = vld [vmem:[#allocation8 + $0x10] sm:$0xff]
    %v65 = vld [vmem:[#allocation8 + $0x18] sm:$0xff]
    %v66 = vld [vmem:[#allocation8 + $0x20] sm:$0xff]
    %v67 = vld [vmem:[#allocation8 + $0x28] sm:$0xff]
    %v68 = vld [vmem:[#allocation8 + $0x30] sm:$0xff]
    %v69 = vld [vmem:[#allocation8 + $0x38] sm:$0xff]
    %v70 = vld [vmem:[#allocation8 + $0x40] sm:$0xff]
    %v71 = vld [vmem:[#allocation8 + $0x48] sm:$0xff]
    %v72 = vld [vmem:[#allocation8 + $0x50] sm:$0xff]
    %v73 = vld [vmem:[#allocation8 + $0x58] sm:$0xff]
    %v74 = vld [vmem:[#allocation8 + $0x60] sm:$0xff]
    %v75 = vld [vmem:[#allocation8 + $0x68] sm:$0xff]
    %v76 = vld [vmem:[#allocation8 + $0x70] sm:$0xff]
    %v77 = vld [vmem:[#allocation8 + $0x78] sm:$0xff]
    %v78 = vld [vmem:[#allocation8 + $0x80] sm:$0xff]
    %v79 = vld [vmem:[#allocation8 + $0x88] sm:$0xff]
    %v80 = vld [vmem:[#allocation8 + $0x90] sm:$0xff]
    %v81 = vld [vmem:[#allocation8 + $0x98] sm:$0xff]
    %v82 = vld [vmem:[#allocation8 + $0xa0] sm:$0xff]
    %v83 = vld [vmem:[#allocation8 + $0xa8] sm:$0xff]
    %v84 = vld [vmem:[#allocation8 + $0xb0] sm:$0xff]
    %v85 = vld [vmem:[#allocation8 + $0xb8] sm:$0xff]
    %v86 = vld [vmem:[#allocation8 + $0xc0] sm:$0xff]
    %v87 = vld [vmem:[#allocation8 + $0xc8] sm:$0xff]
    %v88 = vld [vmem:[#allocation8 + $0xd0] sm:$0xff]
    %v89 = vld [vmem:[#allocation8 + $0xd8] sm:$0xff]
    %v90 = vld [vmem:[#allocation8 + $0xe0] sm:$0xff]
    %v91 = vld [vmem:[#allocation8 + $0xe8] sm:$0xff]
    %v92 = vld [vmem:[#allocation8 + $0xf0] sm:$0xff]
    %v93 = vld [vmem:[#allocation8 + $0xf8] sm:$0xff]
    %v94 = vld [vmem:[#allocation8 + $0x100] sm:$0xff]
    %v95 = vld [vmem:[#allocation8 + $0x108] sm:$0xff]
    %v96 = vld [vmem:[#allocation8 + $0x110] sm:$0xff]
    %v97 = vld [vmem:[#allocation8 + $0x118] sm:$0xff]
    %v98 = vld [vmem:[#allocation8 + $0x120] sm:$0xff]
    %v99 = vld [vmem:[#allocation8 + $0x128] sm:$0xff]
    %v100 = vld [vmem:[#allocation8 + $0x130] sm:$0xff]
    %v101 = vld [vmem:[#allocation8 + $0x138] sm:$0xff]
    %v102 = vld [vmem:[#allocation8 + $0x140] sm:$0xff]
    %v103 = vld [vmem:[#allocation8 + $0x148] sm:$0xff]
    %v104 = vld [vmem:[#allocation8 + $0x150] sm:$0xff]
    %v105 = vld [vmem:[#allocation8 + $0x158] sm:$0xff]
    %v106 = vld [vmem:[#allocation8 + $0x160] sm:$0xff]
    %v107 = vld [vmem:[#allocation8 + $0x168] sm:$0xff]
    %v108 = vld [vmem:[#allocation8 + $0x170] sm:$0xff]
    %v109 = vld [vmem:[#allocation8 + $0x178] sm:$0xff]
    %v110 = vld [vmem:[%s3] sm:$0x1]
    %v112 = vlaneseq
    %v113 = vshrl.u32 %v112, 7
    %v114 = vsub.s32 0, %v113
    %v115 = vrot.slane %v110, %v114
    %v118 = vcombine.high %v61, %v61
    %v120 = vunpack.c.l.s4 1983009808
    %v121 = vunpack.c.0.s8 %v120
    %v122 = vlaneseq
    %v123 = vshrl.u32 %v122, 7
    %v124 = vsub.s32 %v121, %v123
    %v125 = vrot.slane %v61, %v124
    %v127 = vunpack.c.l.s4 1983009808
    %v128 = vunpack.c.0.s8 %v127
    %v129 = vlaneseq
    %v130 = vshrl.u32 %v129, 7
    %v131 = vsub.s32 %v128, %v130
    %v132 = vrot.slane %v118, %v131
    %v133 = vcombine.high %v125, %v125
    %137 = vmatprep.subr.mxu0 0.0
    %138 = vmatpush1.msra.mxu0 %v62
    %139 = vmatprep.subr.mxu0 0.0
    %140 = vmatpush1.msra.mxu0 %v63
    %141 = vmatprep.subr.mxu0 0.0
    %142 = vmatpush1.msra.mxu0 %v64
    %143 = vmatprep.subr.mxu0 0.0
    %144 = vmatpush1.msra.mxu0 %v65
    %145 = vmatprep.subr.mxu0 0.0
    %146 = vmatpush1.msra.mxu0 %v66
    %147 = vmatprep.subr.mxu0 0.0
    %148 = vmatpush1.msra.mxu0 %v67
    %149 = vmatprep.subr.mxu0 0.0
    %150 = vmatpush1.msra.mxu0 %v68
    %151 = vmatprep.subr.mxu0 0.0
    %152 = vmatpush1.msra.mxu0 %v69
    %153 = vmatprep.subr.mxu0 0.0
    %154 = vmatpush1.msra.mxu0 %v70
    %155 = vmatprep.subr.mxu0 0.0
    %156 = vmatpush1.msra.mxu0 %v71
    %157 = vmatprep.subr.mxu0 0.0
    %158 = vmatpush1.msra.mxu0 %v72
    %159 = vmatprep.subr.mxu0 0.0
    %160 = vmatpush1.msra.mxu0 %v73
    %161 = vmatprep.subr.mxu0 0.0
    %162 = vmatpush1.msra.mxu0 %v74
    %163 = vmatprep.subr.mxu0 0.0
    %164 = vmatpush1.msra.mxu0 %v75
    %165 = vmatprep.subr.mxu0 0.0
    %166 = vmatpush1.msra.mxu0 %v76
    %167 = vmatprep.subr.mxu0 0.0
    %168 = vmatpush1.msra.mxu0 %v77
    %169 = vmatprep.subr.mxu0 0.0
    %170 = vmatpush1.msra.mxu0 %v78
    %171 = vmatprep.subr.mxu0 0.0
    %172 = vmatpush1.msra.mxu0 %v79
    %173 = vmatprep.subr.mxu0 0.0
    %174 = vmatpush1.msra.mxu0 %v80
    %175 = vmatprep.subr.mxu0 0.0
    %176 = vmatpush1.msra.mxu0 %v81
    %177 = vmatprep.subr.mxu0 0.0
    %178 = vmatpush1.msra.mxu0 %v82
    %179 = vmatprep.subr.mxu0 0.0
    %180 = vmatpush1.msra.mxu0 %v83
    %181 = vmatprep.subr.mxu0 0.0
    %182 = vmatpush1.msra.mxu0 %v84
    %183 = vmatprep.subr.mxu0 0.0
    %184 = vmatpush1.msra.mxu0 %v85
    %185 = vmatprep.subr.mxu0 0.0
    %186 = vmatpush1.msra.mxu0 %v86
    %187 = vmatprep.subr.mxu0 0.0
    %188 = vmatpush1.msra.mxu0 %v87
    %189 = vmatprep.subr.mxu0 0.0
    %190 = vmatpush1.msra.mxu0 %v88
    %191 = vmatprep.subr.mxu0 0.0
    %192 = vmatpush1.msra.mxu0 %v89
    %193 = vmatprep.subr.mxu0 0.0
    %194 = vmatpush1.msra.mxu0 %v90
    %195 = vmatprep.subr.mxu0 0.0
    %196 = vmatpush1.msra.mxu0 %v91
    %197 = vmatprep.subr.mxu0 0.0
    %198 = vmatpush1.msra.mxu0 %v92
    %199 = vmatprep.subr.mxu0 0.0
    %200 = vmatpush1.msra.mxu0 %v93
    %201 = vmatprep.mubr.f32.mxu0 %v133
    %202 = vmatmul.mubr.f32.gmra.mrb[0].mxu0 %v125
    %v203 = vpop.f32.mrb[0].mxu0
    %v204 = vadd.f32 %v115, %v203
    %v205 = vpop.f32.mrb[0].mxu0
    %206 = vdwg.mxu0
    %207 = vmatprep.subr.mxu0 0.0
    %208 = vmatpush1.msra.mxu0 %v94
    %209 = vmatprep.subr.mxu0 0.0
    %210 = vmatpush1.msra.mxu0 %v95
    %211 = vmatprep.subr.mxu0 0.0
    %212 = vmatpush1.msra.mxu0 %v96
    %213 = vmatprep.subr.mxu0 0.0
    %214 = vmatpush1.msra.mxu0 %v97
    %215 = vmatprep.subr.mxu0 0.0
    %216 = vmatpush1.msra.mxu0 %v98
    %217 = vmatprep.subr.mxu0 0.0
    %218 = vmatpush1.msra.mxu0 %v99
    %219 = vmatprep.subr.mxu0 0.0
    %220 = vmatpush1.msra.mxu0 %v100
    %221 = vmatprep.subr.mxu0 0.0
    %222 = vmatpush1.msra.mxu0 %v101
    %223 = vmatprep.subr.mxu0 0.0
    %224 = vmatpush1.msra.mxu0 %v102
    %225 = vmatprep.subr.mxu0 0.0
    %226 = vmatpush1.msra.mxu0 %v103
    %227 = vmatprep.subr.mxu0 0.0
    %228 = vmatpush1.msra.mxu0 %v104
    %229 = vmatprep.subr.mxu0 0.0
    %230 = vmatpush1.msra.mxu0 %v105
    %231 = vmatprep.subr.mxu0 0.0
    %232 = vmatpush1.msra.mxu0 %v106
    %233 = vmatprep.subr.mxu0 0.0
    %234 = vmatpush1.msra.mxu0 %v107
    %235 = vmatprep.subr.mxu0 0.0
    %236 = vmatpush1.msra.mxu0 %v108
    %237 = vmatprep.subr.mxu0 0.0
    %238 = vmatpush1.msra.mxu0 %v109
    %239 = vmatprep.subr.mxu0 0.0
    %240 = vmatpush1.msra.mxu0 0.0
    %241 = vmatprep.subr.mxu0 0.0
    %242 = vmatpush1.msra.mxu0 0.0
    %243 = vmatprep.subr.mxu0 0.0
    %244 = vmatpush1.msra.mxu0 0.0
    %245 = vmatprep.subr.mxu0 0.0
    %246 = vmatpush1.msra.mxu0 0.0
    %247 = vmatprep.subr.mxu0 0.0
    %248 = vmatpush1.msra.mxu0 0.0
    %249 = vmatprep.subr.mxu0 0.0
    %250 = vmatpush1.msra.mxu0 0.0
    %251 = vmatprep.subr.mxu0 0.0
    %252 = vmatpush1.msra.mxu0 0.0
    %253 = vmatprep.subr.mxu0 0.0
    %254 = vmatpush1.msra.mxu0 0.0
    %255 = vmatprep.subr.mxu0 0.0
    %256 = vmatpush1.msra.mxu0 0.0
    %257 = vmatprep.subr.mxu0 0.0
    %258 = vmatpush1.msra.mxu0 0.0
    %259 = vmatprep.subr.mxu0 0.0
    %260 = vmatpush1.msra.mxu0 0.0
    %261 = vmatprep.subr.mxu0 0.0
    %262 = vmatpush1.msra.mxu0 0.0
    %263 = vmatprep.subr.mxu0 0.0
    %264 = vmatpush1.msra.mxu0 0.0
    %265 = vmatprep.subr.mxu0 0.0
    %266 = vmatpush1.msra.mxu0 0.0
    %267 = vmatprep.subr.mxu0 0.0
    %268 = vmatpush1.msra.mxu0 0.0
    %269 = vmatprep.subr.mxu0 0.0
    %270 = vmatpush1.msra.mxu0 0.0
    %271 = vmatprep.mubr.f32.mxu0 0.0
    %272 = vmatmul.mubr.f32.gmra.mrb[0].mxu0 %v132
    %v273 = vpop.f32.mrb[0].mxu0
    %v274 = vadd.f32 %v204, %v273
    %v275 = vpop.f32.mrb[0].mxu0
    %276 = vdwg.mxu0
    %v277 = vtanh.pop %v274
    %278 = vst [vmem:[#allocation9] sm:$0x3] %v277
    // Predicated region
    $region30: #{controller_forward.1} parent=1 // pred_check
      _
    $region31: #{controller_forward.1} parent=1 // pred_check_branch
      %280 = sbr.rel (0) target = $region33
    $region32: #{controller_forward.1} parent=1 // pred_region
      %s282 = ssub.s32 32, 32
      %283 = vsyncadd [#allocation5], %s282
      %s285 = sshll.u32 [#allocation9], 4
      %s286 = int_to_ptr.vmem [resolvable:$true] %s285
      %288 = dma.vmem_to_hbm [thread:$0]  %s286, 32, %s4, [#allocation5]
    $region33: #{controller_forward.1} parent=1 // pred_fallthru
      _
    // Predicated region
    $region34: #{controller_forward.1} parent=1 // pred_check
      _
    $region35: #{controller_forward.1} parent=1 // pred_check_branch
      %290 = sbr.rel (0) target = $region37
    $region36: #{controller_forward.1} parent=1 // pred_region
      %291 = dma.done [#allocation5], 32
    $region37: #{controller_forward.1} parent=1 // pred_fallthru
      _
    %292 = vsyncpa [#allocation4], 1
    %293 = vsyncpa [#allocation7], 1
    %294 = vsyncpa [#allocation5], 1

</llo_original>
